<compile_context>
chip_gen: v7x
topology: tpu7x:2x2x1
jax: 0.10.0
libtpu: 0.0.40
codegen_flags: <defaults>
</compile_context>

<pallas_src>
import functools

import jax
import jax.numpy as jnp
from jax.experimental import pallas as pl
from jax.experimental.pallas import tpu as pltpu

EPS = 1e-5
_VMEM_LIMIT_BYTES = 32 * 1024 * 1024   # safe on v5e / v6e / v7x
_MAX_BLOCK_BYTES = 4 << 20             # per-input-block budget (~4 MiB)


def _pick_hw_tile(hw, c, itemsize):
    """Largest lane-dense (multiple-of-128) tile along H*W that divides hw
    and fits the per-block byte budget. Falls back to the full extent when
    hw is not a multiple of 128 (full-dim blocks are always legal)."""
    if hw % 128 != 0:
        # TODO(synk): irregular spatial extents take the full H*W as one block.
        return hw
    max_elems = max(128, (_MAX_BLOCK_BYTES // max(1, c * itemsize)) // 128 * 128)
    t = min(hw, max_elems)
    while t > 128 and hw % t != 0:
        t -= 128
    return t


def _stats_kernel(x_ref, gamma_ref, beta_ref, scale_ref, shift_ref,
                  sum_ref, sumsq_ref, *, total_count, eps):
    """Pass 1: accumulate per-channel sum / sumsq over row tiles; on the last
    grid step finalize the fused per-channel scale and shift."""
    step = pl.program_id(0) * pl.num_programs(1) + pl.program_id(1)
    last = pl.num_programs(0) * pl.num_programs(1) - 1

    @pl.when(step == 0)
    def _():
        sum_ref[...] = jnp.zeros_like(sum_ref)
        sumsq_ref[...] = jnp.zeros_like(sumsq_ref)

    x = x_ref[0].astype(jnp.float32)                          # (C, T_HW)
    sum_ref[...] += jnp.sum(x, axis=1, keepdims=True)         # (C, 1)
    sumsq_ref[...] += jnp.sum(x * x, axis=1, keepdims=True)   # (C, 1)

    @pl.when(step == last)
    def _():
        inv_n = 1.0 / total_count
        mean = sum_ref[...] * inv_n
        var = sumsq_ref[...] * inv_n - mean * mean            # biased (training) var
        var = jnp.maximum(var, 0.0)                           # guard cancellation
        inv_std = jax.lax.rsqrt(var + eps)
        scale = gamma_ref[...] * inv_std
        scale_ref[...] = scale
        shift_ref[...] = beta_ref[...] - mean * scale


def _norm_kernel(x_ref, scale_ref, shift_ref, o_ref):
    """Pass 2: y = x * scale + shift (per channel), lane-dense tiles."""
    x = x_ref[...].astype(jnp.float32)                        # (1, C, T_HW)
    o_ref[...] = (x * scale_ref[...] + shift_ref[...]).astype(o_ref.dtype)


def batch_norm_2d(x_nchw, gamma, beta, eps=EPS):
    """BatchNorm2d forward (training-mode batch statistics).

    x_nchw: (N, C, H, W); gamma, beta: (C,).  Returns (N, C, H, W).
    """
    n, c, h, w = x_nchw.shape
    hw = h * w
    x3d = x_nchw.reshape(n, c, hw)            # free reshape: C on sublanes, HW on lanes
    gamma2d = gamma.reshape(c, 1).astype(jnp.float32)
    beta2d = beta.reshape(c, 1).astype(jnp.float32)

    t_hw = _pick_hw_tile(hw, c, jnp.dtype(x_nchw.dtype).itemsize)
    num_t = hw // t_hw
    total = n * hw

    # ---- Pass 1: per-channel fused scale/shift from batch statistics ------
    scale, shift = pl.pallas_call(
        functools.partial(_stats_kernel, total_count=total, eps=eps),
        out_shape=(jax.ShapeDtypeStruct((c, 1), jnp.float32),
                   jax.ShapeDtypeStruct((c, 1), jnp.float32)),
        grid_spec=pltpu.PrefetchScalarGridSpec(
            num_scalar_prefetch=0,
            grid=(n, num_t),
            in_specs=[
                pl.BlockSpec((1, c, t_hw), lambda i, t: (i, 0, t)),
                pl.BlockSpec((c, 1), lambda i, t: (0, 0)),
                pl.BlockSpec((c, 1), lambda i, t: (0, 0)),
            ],
            out_specs=[
                pl.BlockSpec((c, 1), lambda i, t: (0, 0)),
                pl.BlockSpec((c, 1), lambda i, t: (0, 0)),
            ],
            scratch_shapes=[pltpu.VMEM((c, 1), jnp.float32),
                            pltpu.VMEM((c, 1), jnp.float32)],
        ),
        compiler_params=pltpu.CompilerParams(
            dimension_semantics=("arbitrary", "arbitrary"),
            vmem_limit_bytes=_VMEM_LIMIT_BYTES,
        ),
    )(x3d, gamma2d, beta2d)

    # ---- Pass 2: tiled, lane-dense fused normalize -------------------------
    out3d = pl.pallas_call(
        _norm_kernel,
        out_shape=jax.ShapeDtypeStruct((n, c, hw), x_nchw.dtype),
        grid_spec=pltpu.PrefetchScalarGridSpec(
            num_scalar_prefetch=0,
            grid=(n, num_t),
            in_specs=[
                pl.BlockSpec((1, c, t_hw), lambda i, t: (i, 0, t)),
                pl.BlockSpec((c, 1), lambda i, t: (0, 0)),
                pl.BlockSpec((c, 1), lambda i, t: (0, 0)),
            ],
            out_specs=pl.BlockSpec((1, c, t_hw), lambda i, t: (i, 0, t)),
        ),
        compiler_params=pltpu.CompilerParams(
            dimension_semantics=("parallel", "parallel"),
            vmem_limit_bytes=_VMEM_LIMIT_BYTES,
        ),
    )(x3d, scale, shift)

    return out3d.reshape(n, c, h, w)


if __name__ == "__main__":
    key = jax.random.PRNGKey(0)
    N, C, H, W = 2, 4, 16, 16

    x = jax.random.normal(key, (N, C, H, W), dtype=jnp.float32)

    # nn.BatchNorm2d default parameter init: weight=1, bias=0.
    gamma = jnp.ones((C,), dtype=jnp.float32)
    beta = jnp.zeros((C,), dtype=jnp.float32)

    out = batch_norm_2d(x, gamma, beta)
    out = jax.block_until_ready(out)

    # Reference: plain-JAX BatchNorm2d training-mode forward.
    mean = jnp.mean(x, axis=(0, 2, 3), keepdims=True)
    var = jnp.mean((x - mean) ** 2, axis=(0, 2, 3), keepdims=True)
    ref = (x - mean) / jnp.sqrt(var + EPS) * gamma.reshape(1, C, 1, 1) \
        + beta.reshape(1, C, 1, 1)
    assert jnp.allclose(out, ref, atol=1e-4, rtol=1e-4), "mismatch vs reference"

    print("KERNEL_OK")
</pallas_src>

<mosaic_0001>
module attributes {stable_mosaic.version = 11 : i64} {
  func.func @_stats_kernel(%arg0: i32, %arg1: i32, %arg2: memref<1x4x256xf32, #tpu.memory_space<vmem>>, %arg3: memref<4x1xf32, #tpu.memory_space<vmem>>, %arg4: memref<4x1xf32, #tpu.memory_space<vmem>>, %arg5: memref<4x1xf32, #tpu.memory_space<vmem>>, %arg6: memref<4x1xf32, #tpu.memory_space<vmem>>, %arg7: memref<4x1xf32, #tpu.memory_space<vmem>>, %arg8: memref<4x1xf32, #tpu.memory_space<vmem>>) attributes {dimension_semantics = [#tpu.dimension_semantics<arbitrary>, #tpu.dimension_semantics<arbitrary>], iteration_bounds = array<i64: 2, 1>, scalar_prefetch = 0 : i64, scratch_operands = 2 : i64, tpu.core_type = #tpu.core_type<tc>, window_params = [{transform_indices = @transform_0, window_bounds = array<i64: 1, 4, 256>}, {pipeline_mode = #tpu.pipeline_mode<synchronous>, transform_indices = @transform_1, window_bounds = array<i64: 4, 1>}, {pipeline_mode = #tpu.pipeline_mode<synchronous>, transform_indices = @transform_2, window_bounds = array<i64: 4, 1>}, {pipeline_mode = #tpu.pipeline_mode<synchronous>, transform_indices = @transform_3, window_bounds = array<i64: 4, 1>}, {pipeline_mode = #tpu.pipeline_mode<synchronous>, transform_indices = @transform_4, window_bounds = array<i64: 4, 1>}]} {
    %c1_i32 = arith.constant 1 : i32
    %0 = arith.muli %arg0, %c1_i32 : i32
    %1 = arith.addi %0, %arg1 : i32
    %c0_i32 = arith.constant 0 : i32
    %2 = arith.cmpi eq, %1, %c0_i32 : i32
    %3 = arith.extui %2 : i1 to i32
    %c0_i32_0 = arith.constant 0 : i32
    %4 = arith.cmpi ne, %3, %c0_i32_0 : i32
    scf.if %4 {
      %cst_14 = arith.constant 0.000000e+00 : f32
      %21 = vector.broadcast %cst_14 : f32 to vector<4x1xf32>
      %c0_15 = arith.constant 0 : index
      %c0_16 = arith.constant 0 : index
      %22 = vector.load %arg7[%c0_15, %c0_16] : memref<4x1xf32, #tpu.memory_space<vmem>>, vector<4x1xf32>
      tpu.vector_store %arg7[%c0_15, %c0_16], %21 {strides = array<i32>} : memref<4x1xf32, #tpu.memory_space<vmem>>, vector<4x1xf32>,
      %cst_17 = arith.constant 0.000000e+00 : f32
      %23 = vector.broadcast %cst_17 : f32 to vector<4x1xf32>
      %c0_18 = arith.constant 0 : index
      %c0_19 = arith.constant 0 : index
      %24 = vector.load %arg8[%c0_18, %c0_19] : memref<4x1xf32, #tpu.memory_space<vmem>>, vector<4x1xf32>
      tpu.vector_store %arg8[%c0_18, %c0_19], %23 {strides = array<i32>} : memref<4x1xf32, #tpu.memory_space<vmem>>, vector<4x1xf32>,
    } else {
    }
    %c0 = arith.constant 0 : index
    %c0_1 = arith.constant 0 : index
    %c0_2 = arith.constant 0 : index
    %5 = vector.load %arg2[%c0, %c0_1, %c0_2] : memref<1x4x256xf32, #tpu.memory_space<vmem>>, vector<1x4x256xf32>
    %6 = vector.shape_cast %5 : vector<1x4x256xf32> to vector<4x256xf32>
    %c0_3 = arith.constant 0 : index
    %c0_4 = arith.constant 0 : index
    %7 = vector.load %arg7[%c0_3, %c0_4] : memref<4x1xf32, #tpu.memory_space<vmem>>, vector<4x1xf32>
    %cst = arith.constant dense<0.000000e+00> : vector<4xf32>
    %8 = vector.multi_reduction <add>, %6, %cst [1] : vector<4x256xf32> to vector<4xf32>
    %9 = vector.shape_cast %8 : vector<4xf32> to vector<4x1xf32>
    %10 = arith.addf %7, %9 : vector<4x1xf32>
    %c0_5 = arith.constant 0 : index
    %c0_6 = arith.constant 0 : index
    %11 = vector.load %arg7[%c0_5, %c0_6] : memref<4x1xf32, #tpu.memory_space<vmem>>, vector<4x1xf32>
    tpu.vector_store %arg7[%c0_5, %c0_6], %10 {strides = array<i32>} : memref<4x1xf32, #tpu.memory_space<vmem>>, vector<4x1xf32>,
    %c0_7 = arith.constant 0 : index
    %c0_8 = arith.constant 0 : index
    %12 = vector.load %arg8[%c0_7, %c0_8] : memref<4x1xf32, #tpu.memory_space<vmem>>, vector<4x1xf32>
    %13 = arith.mulf %6, %6 : vector<4x256xf32>
    %cst_9 = arith.constant dense<0.000000e+00> : vector<4xf32>
    %14 = vector.multi_reduction <add>, %13, %cst_9 [1] : vector<4x256xf32> to vector<4xf32>
    %15 = vector.shape_cast %14 : vector<4xf32> to vector<4x1xf32>
    %16 = arith.addf %12, %15 : vector<4x1xf32>
    %c0_10 = arith.constant 0 : index
    %c0_11 = arith.constant 0 : index
    %17 = vector.load %arg8[%c0_10, %c0_11] : memref<4x1xf32, #tpu.memory_space<vmem>>, vector<4x1xf32>
    tpu.vector_store %arg8[%c0_10, %c0_11], %16 {strides = array<i32>} : memref<4x1xf32, #tpu.memory_space<vmem>>, vector<4x1xf32>,
    %c1_i32_12 = arith.constant 1 : i32
    %18 = arith.cmpi eq, %1, %c1_i32_12 : i32
    %19 = arith.extui %18 : i1 to i32
    %c0_i32_13 = arith.constant 0 : i32
    %20 = arith.cmpi ne, %19, %c0_i32_13 : i32
    scf.if %20 {
      %c0_14 = arith.constant 0 : index
      %c0_15 = arith.constant 0 : index
      %21 = vector.load %arg7[%c0_14, %c0_15] : memref<4x1xf32, #tpu.memory_space<vmem>>, vector<4x1xf32>
      %cst_16 = arith.constant 0.001953125 : f32
      %22 = vector.broadcast %cst_16 : f32 to vector<4x1xf32>
      %23 = arith.mulf %21, %22 : vector<4x1xf32>
      %c0_17 = arith.constant 0 : index
      %c0_18 = arith.constant 0 : index
      %24 = vector.load %arg8[%c0_17, %c0_18] : memref<4x1xf32, #tpu.memory_space<vmem>>, vector<4x1xf32>
      %cst_19 = arith.constant 0.001953125 : f32
      %25 = vector.broadcast %cst_19 : f32 to vector<4x1xf32>
      %26 = arith.mulf %24, %25 : vector<4x1xf32>
      %27 = arith.mulf %23, %23 : vector<4x1xf32>
      %28 = arith.subf %26, %27 : vector<4x1xf32>
      %cst_20 = arith.constant 0.000000e+00 : f32
      %29 = vector.broadcast %cst_20 : f32 to vector<4x1xf32>
      %30 = arith.maximumf %28, %29 : vector<4x1xf32>
      %cst_21 = arith.constant 9.99999974E-6 : f32
      %31 = vector.broadcast %cst_21 : f32 to vector<4x1xf32>
      %32 = arith.addf %30, %31 : vector<4x1xf32>
      %33 = math.rsqrt %32 : vector<4x1xf32>
      %c0_22 = arith.constant 0 : index
      %c0_23 = arith.constant 0 : index
      %34 = vector.load %arg3[%c0_22, %c0_23] : memref<4x1xf32, #tpu.memory_space<vmem>>, vector<4x1xf32>
      %35 = arith.mulf %34, %33 : vector<4x1xf32>
      %c0_24 = arith.constant 0 : index
      %c0_25 = arith.constant 0 : index
      %36 = vector.load %arg5[%c0_24, %c0_25] : memref<4x1xf32, #tpu.memory_space<vmem>>, vector<4x1xf32>
      tpu.vector_store %arg5[%c0_24, %c0_25], %35 {strides = array<i32>} : memref<4x1xf32, #tpu.memory_space<vmem>>, vector<4x1xf32>,
      %c0_26 = arith.constant 0 : index
      %c0_27 = arith.constant 0 : index
      %37 = vector.load %arg4[%c0_26, %c0_27] : memref<4x1xf32, #tpu.memory_space<vmem>>, vector<4x1xf32>
      %38 = arith.mulf %23, %35 : vector<4x1xf32>
      %39 = arith.subf %37, %38 : vector<4x1xf32>
      %c0_28 = arith.constant 0 : index
      %c0_29 = arith.constant 0 : index
      %40 = vector.load %arg6[%c0_28, %c0_29] : memref<4x1xf32, #tpu.memory_space<vmem>>, vector<4x1xf32>
      tpu.vector_store %arg6[%c0_28, %c0_29], %39 {strides = array<i32>} : memref<4x1xf32, #tpu.memory_space<vmem>>, vector<4x1xf32>,
    } else {
    }
    return
  }
  func.func @transform_0(%arg0: i32, %arg1: i32) -> (i32, i32, i32) {
    %c0_i32 = arith.constant 0 : i32
    %c0_i32_0 = arith.constant 0 : i32
    return %arg0, %c0_i32, %arg1 : i32, i32, i32
  }
  func.func @transform_1(%arg0: i32, %arg1: i32) -> (i32, i32) {
    %c0_i32 = arith.constant 0 : i32
    %c0_i32_0 = arith.constant 0 : i32
    %c0_i32_1 = arith.constant 0 : i32
    return %c0_i32, %c0_i32_0 : i32, i32
  }
  func.func @transform_2(%arg0: i32, %arg1: i32) -> (i32, i32) {
    %c0_i32 = arith.constant 0 : i32
    %c0_i32_0 = arith.constant 0 : i32
    %c0_i32_1 = arith.constant 0 : i32
    return %c0_i32, %c0_i32_0 : i32, i32
  }
  func.func @transform_3(%arg0: i32, %arg1: i32) -> (i32, i32) {
    %c0_i32 = arith.constant 0 : i32
    %c0_i32_0 = arith.constant 0 : i32
    %c0_i32_1 = arith.constant 0 : i32
    return %c0_i32, %c0_i32_0 : i32, i32
  }
  func.func @transform_4(%arg0: i32, %arg1: i32) -> (i32, i32) {
    %c0_i32 = arith.constant 0 : i32
    %c0_i32_0 = arith.constant 0 : i32
    %c0_i32_1 = arith.constant 0 : i32
    return %c0_i32, %c0_i32_0 : i32, i32
  }
}

</mosaic_0001>

<llo_original>
// kernel: tpu_custom_call.1
$region0: #{tpu_custom_call.1}
  #allocation0 [shape = 'u32[]', space=smem, size = 0x4, offset = 0x4, fixed_abs, tag = 'smem constant byte address 0x4 - core index']
  #allocation1 [shape = 'u32[144,128]{1,0:T(1,128)}', space=vmem, size = 0x12000, scoped, tag = 'internal scratch']
  #allocation2 [shape = 'f32[4,1]{1,0:T(4,128)}', space=vmem, size = 0x800, scoped, tag = 'scratch operand']
  #allocation3 [shape = 'f32[4,1]{1,0:T(4,128)}', space=vmem, size = 0x800, scoped, tag = 'scratch operand']
  %s0 = inlined_call_operand.hbm [shape: f32[2,4,256], index: 0, kind: input, shape index: {}]
  %s1 = inlined_call_operand.vmem [shape: f32[4,1], index: 1, kind: input, shape index: {}]
  %s2 = inlined_call_operand.vmem [shape: f32[4,1], index: 2, kind: input, shape index: {}]
  %s3 = inlined_call_operand.vmem [shape: f32[4,1], index: 3, kind: output, shape index: {0}]
  %s4 = inlined_call_operand.vmem [shape: f32[4,1], index: 4, kind: output, shape index: {1}]
  %5 = xla_tuple %s3, %s4
  %s6 = sld [smem:[#allocation0]]
  $region65: #{tpu_custom_call.1} parent=0
    _
  %s8 = ssub.s32 1, %s6
  %s9 = scalar_select 0, %s8, %s6
  $region1: #{tpu_custom_call.1} parent=0
    #allocation4 [shape = 'u8[8192]{0}', space=vmem, size = 0x2000, scoped, tag = 'input window, operand 0']
    #allocation5 [shape = 's32[2]{0}', space=sflag, size = 0x8, scoped, tag = 'scoped memory for tpu_custom_call.1']
    %10 = vsyncpa [#allocation5], 0
    %s11 = scalar_lea.sflag [#allocation5], 1
    %12 = vsyncpa %s11, 0
    loop: start=0, step=1, limit=4
    $region2: #{tpu_custom_call.1} parent=1 // loop_pre_header
      _
    $region3: #{tpu_custom_call.1} parent=1 // loop_header
      %s14 = sphi 0, %s18
      %p15 = scmp.ge.s32.totalorder %s14, 4
      %s21 = sphi 0, %s33
      %s22 = sphi 0, %s29
      %s23 = sphi 0, %s21
      %s24 = sphi 0, %s22
      %s25 = sphi 0, %s23
      %s26 = sphi 0, %s24
      %s38 = sphi 0, %s40
      %s41 = sphi 0, %s38
      %s42 = sphi 0, %s41
      %s58 = sphi 0, %s42
      %s62 = sphi 0, %s62
      %s64 = sphi 0, %s62
      %s65 = sphi 0, %s64
      %s79 = sphi 0, %s65
      %s83 = sphi 0, %s83
      %s85 = sphi 0, %s83
      %s86 = sphi 0, %s85
      %s100 = sphi 0, %s86
      %s104 = sphi 0, %s104
      %s106 = sphi 0, %s104
      %s107 = sphi 0, %s106
      %s121 = sphi 0, %s107
      %s125 = sphi 0, %s125
      %s127 = sphi 0, %s125
      %s128 = sphi 0, %s127
      %s142 = sphi 0, %s128
    $region4: #{tpu_custom_call.1} parent=1 // loop_header_branch
      %17 = sbr.rel (%p15) target = $region8
    $region5: #{tpu_custom_call.1} parent=1 // loop_body
      %s19 = ssub.s32 %s14, 1
      %s20 = ssub.s32 %s14, 2
      %s27 = sadd.s32 1, %s22
      %p28 = scmp.ge.s32.totalorder %s27, 1
      %s29 = scalar_select %p28, 0, %s27
      %s30 = sadd.s32 1, %s21
      %s31 = scalar_select %p28, %s30, %s21
      %p32 = scmp.ge.s32.totalorder %s31, 2
      %s33 = scalar_select %p32, 0, %s31
      %s34 = ssub.s32 %s21, %s33
      %s35 = ssub.s32 %s22, %s29
      %s36 = sor.u32 %s34, %s35
      %p37 = scmp.eq.s32.totalorder %s36, 0
      %s39 = sadd.s32 %s38, 1
      %s40 = scalar_select %p37, %s38, %s39
      %p43 = pneg %p37
      %p44 = scmp.eq.s32.totalorder %s14, 1
      %p45 = por %p43, %p44
      %p46 = scmp.ne.s32.totalorder %s38, %s41
      %p47 = scmp.eq.s32.totalorder %s14, 0
      %p48 = por %p46, %p47
      %p49 = scmp.ne.s32.totalorder %s38, %s41
      %p50 = scmp.eq.s32.totalorder %s19, 1
      %p51 = por %p49, %p50
      %p52 = scmp.ne.s32.totalorder %s41, %s42
      %p53 = scmp.eq.s32.totalorder %s19, 0
      %p54 = por %p52, %p53
      %p55 = scmp.ne.s32.totalorder %s41, %s42
      %p56 = scmp.eq.s32.totalorder %s20, 1
      %p57 = por %p55, %p56
      %p59 = scmp.ne.s32.totalorder %s42, %s58
      %p60 = scmp.eq.s32.totalorder %s20, 0
      %p61 = por %p59, %p60
      %s63 = sadd.s32 %s62, 1
      %p66 = scmp.eq.s32.totalorder %s14, 1
      %p67 = scmp.ne.s32.totalorder %s62, %s64
      %p68 = scmp.eq.s32.totalorder %s14, 0
      %p69 = por %p67, %p68
      %p70 = scmp.ne.s32.totalorder %s62, %s64
      %p71 = scmp.eq.s32.totalorder %s19, 1
      %p72 = por %p70, %p71
      %p73 = scmp.ne.s32.totalorder %s64, %s65
      %p74 = scmp.eq.s32.totalorder %s19, 0
      %p75 = por %p73, %p74
      %p76 = scmp.ne.s32.totalorder %s64, %s65
      %p77 = scmp.eq.s32.totalorder %s20, 1
      %p78 = por %p76, %p77
      %p80 = scmp.ne.s32.totalorder %s65, %s79
      %p81 = scmp.eq.s32.totalorder %s20, 0
      %p82 = por %p80, %p81
      %s84 = sadd.s32 %s83, 1
      %p87 = scmp.eq.s32.totalorder %s14, 1
      %p88 = scmp.ne.s32.totalorder %s83, %s85
      %p89 = scmp.eq.s32.totalorder %s14, 0
      %p90 = por %p88, %p89
      %p91 = scmp.ne.s32.totalorder %s83, %s85
      %p92 = scmp.eq.s32.totalorder %s19, 1
      %p93 = por %p91, %p92
      %p94 = scmp.ne.s32.totalorder %s85, %s86
      %p95 = scmp.eq.s32.totalorder %s19, 0
      %p96 = por %p94, %p95
      %p97 = scmp.ne.s32.totalorder %s85, %s86
      %p98 = scmp.eq.s32.totalorder %s20, 1
      %p99 = por %p97, %p98
      %p101 = scmp.ne.s32.totalorder %s86, %s100
      %p102 = scmp.eq.s32.totalorder %s20, 0
      %p103 = por %p101, %p102
      %s105 = sadd.s32 %s104, 1
      %p108 = scmp.eq.s32.totalorder %s14, 1
      %p109 = scmp.ne.s32.totalorder %s104, %s106
      %p110 = scmp.eq.s32.totalorder %s14, 0
      %p111 = por %p109, %p110
      %p112 = scmp.ne.s32.totalorder %s104, %s106
      %p113 = scmp.eq.s32.totalorder %s19, 1
      %p114 = por %p112, %p113
      %p115 = scmp.ne.s32.totalorder %s106, %s107
      %p116 = scmp.eq.s32.totalorder %s19, 0
      %p117 = por %p115, %p116
      %p118 = scmp.ne.s32.totalorder %s106, %s107
      %p119 = scmp.eq.s32.totalorder %s20, 1
      %p120 = por %p118, %p119
      %p122 = scmp.ne.s32.totalorder %s107, %s121
      %p123 = scmp.eq.s32.totalorder %s20, 0
      %p124 = por %p122, %p123
      %s126 = sadd.s32 %s125, 1
      %p129 = scmp.eq.s32.totalorder %s14, 1
      %p130 = scmp.ne.s32.totalorder %s125, %s127
      %p131 = scmp.eq.s32.totalorder %s14, 0
      %p132 = por %p130, %p131
      %p133 = scmp.ne.s32.totalorder %s125, %s127
      %p134 = scmp.eq.s32.totalorder %s19, 1
      %p135 = por %p133, %p134
      %p136 = scmp.ne.s32.totalorder %s127, %s128
      %p137 = scmp.eq.s32.totalorder %s19, 0
      %p138 = por %p136, %p137
      %p139 = scmp.ne.s32.totalorder %s127, %s128
      %p140 = scmp.eq.s32.totalorder %s20, 1
      %p141 = por %p139, %p140
      %p143 = scmp.ne.s32.totalorder %s128, %s142
      %p144 = scmp.eq.s32.totalorder %s20, 0
      %p145 = por %p143, %p144
      %p146 = scmp.le.s32.totalorder 1, %s14
      %p147 = scmp.lt.s32.totalorder %s14, 3
      %p148 = pnand %p146, %p147
      %p149 = pneg %p148
      // Predicated region
      $region9: #{tpu_custom_call.1} parent=5 // pred_check
        _
      $region10: #{tpu_custom_call.1} parent=5 // pred_check_branch
        %151 = sbr.rel (%p148) target = $region12
      $region11: #{tpu_custom_call.1} parent=5 // pred_region
        %s152 = ssub.s32 %s14, 1
        // Predicated region
        $region13: #{tpu_custom_call.1} parent=11 // pred_check
          %p153 = pneg %p75
        $region14: #{tpu_custom_call.1} parent=11 // pred_check_branch
          %155 = sbr.rel (%p153) target = $region16
        $region15: #{tpu_custom_call.1} parent=11 // pred_region
          _
        $region16: #{tpu_custom_call.1} parent=11 // pred_fallthru
          _
        // Predicated region
        $region17: #{tpu_custom_call.1} parent=11 // pred_check
          %p156 = pneg %p96
        $region18: #{tpu_custom_call.1} parent=11 // pred_check_branch
          %158 = sbr.rel (%p156) target = $region20
        $region19: #{tpu_custom_call.1} parent=11 // pred_region
          _
        $region20: #{tpu_custom_call.1} parent=11 // pred_fallthru
          _
      $region12: #{tpu_custom_call.1} parent=5 // pred_fallthru
        _
      %p159 = scmp.lt.s32.totalorder %s14, 2
      // Predicated region
      $region21: #{tpu_custom_call.1} parent=5 // pred_check
        %p160 = pneg %p159
      $region22: #{tpu_custom_call.1} parent=5 // pred_check_branch
        %162 = sbr.rel (%p160) target = $region24
      $region23: #{tpu_custom_call.1} parent=5 // pred_region
        // Predicated region
        $region25: #{tpu_custom_call.1} parent=23 // pred_check
          %p163 = pneg %p48
        $region26: #{tpu_custom_call.1} parent=23 // pred_check_branch
          %165 = sbr.rel (%p163) target = $region28
        $region27: #{tpu_custom_call.1} parent=23 // pred_region
          %s166 = sand.u32 %s38, 1
          %s167 = scalar_lea.sflag [#allocation5], %s166
          %s168 = sand.u32 %s38, 1
          %s169 = smul.addr %s168, 8
          %s170 = scalar_lea.vmem [#allocation4], %s169
          %s171 = smul.u32 2, %s22
          %s173 = ssub.s32 128, 128
          %174 = vsyncadd %s167, %s173
          %s175 = smul.addr %s21, 2
          %s176 = sadd.s32 %s171, %s175
          %s177 = smul.addr %s176, 64
          %s178 = scalar_lea.hbm %s0, %s177
          %s180 = sshll.u32 %s170, 4
          %s181 = int_to_ptr.vmem [resolvable:$true] %s180
          %183 = dma.hbm_to_vmem [thread:$0]  %s178, 128, %s181, %s167
        $region28: #{tpu_custom_call.1} parent=23 // pred_fallthru
          _
      $region24: #{tpu_custom_call.1} parent=5 // pred_fallthru
        _
      %p184 = scmp.le.s32.totalorder 1, %s14
      %p185 = scmp.lt.s32.totalorder %s14, 3
      %p186 = pnand %p184, %p185
      %p187 = pneg %p186
      // Predicated region
      $region29: #{tpu_custom_call.1} parent=5 // pred_check
        _
      $region30: #{tpu_custom_call.1} parent=5 // pred_check_branch
        %189 = sbr.rel (%p186) target = $region32
      $region31: #{tpu_custom_call.1} parent=5 // pred_region
        %s190 = ssub.s32 %s14, 1
        %s191 = sand.u32 %s41, 1
        %s192 = scalar_lea.sflag [#allocation5], %s191
        %s193 = sand.u32 %s41, 1
        %s194 = smul.addr %s193, 8
        %s195 = scalar_lea.vmem [#allocation4], %s194
        // Predicated region
        $region33: #{tpu_custom_call.1} parent=31 // pred_check
          %p196 = pneg %p54
        $region34: #{tpu_custom_call.1} parent=31 // pred_check_branch
          %198 = sbr.rel (%p196) target = $region36
        $region35: #{tpu_custom_call.1} parent=31 // pred_region
          %199 = dma.done %s192, 128
        $region36: #{tpu_custom_call.1} parent=31 // pred_fallthru
          _
        %s200 = sand.u32 %s41, 1
        %s201 = scalar_lea.sflag [#allocation5], %s200
        %s202 = sand.u32 %s41, 1
        %s203 = smul.addr %s202, 8
        %s204 = scalar_lea.vmem [#allocation4], %s203
        %p205 = pneg %p54
        %p206 = pneg %p51
        %p207 = pneg %p75
        %p208 = pneg %p72
        %p209 = pneg %p96
        %p210 = pneg %p93
        %p211 = pneg %p117
        %p212 = pneg %p114
        %p213 = pneg %p138
        %p214 = pneg %p135
        %s215 = smul.u32 2, %s24
        %s216 = sadd.s32 %s23, %s24
        %p217 = scmp.eq.s32.totalorder %s216, 0
        // Predicated region
        $region37: #{tpu_custom_call.1} parent=31 // pred_check
          %p218 = pneg %p217
        $region38: #{tpu_custom_call.1} parent=31 // pred_check_branch
          %220 = sbr.rel (%p218) target = $region40
        $region39: #{tpu_custom_call.1} parent=31 // pred_region
          %vm221 = vcmask 3072
          %222 = vst.msk [vmem:[#allocation2] sm:$0xf] %vm221, 0.0
          %223 = vst.msk [vmem:[#allocation3] sm:$0xf] %vm221, 0.0
        $region40: #{tpu_custom_call.1} parent=31 // pred_fallthru
          _
        %v224 = vld [vmem:[%s195] sm:$0xff]
        %v225 = vld [vmem:[#allocation2] sm:$0xf]
        %v227 = vcombine.high %v224, %v224
        %vm229 = vcmask 1043456
        %v230 = vsel %vm229, %v224, 0.0
        %v231 = vsel %vm229, %v227, 0.0
        %v232 = vadd.f32 %v230, %v231
        %233 = vadd.xlane.f32.xlu0 %v232
        %v234 = vpop.xlane.xlu0 %233
        %v235 = vadd.f32 %v225, %v234
        %vm236 = vcmask 3072
        %237 = vst.msk [vmem:[#allocation2] sm:$0xf] %vm236, %v235
        %v238 = vld [vmem:[#allocation3] sm:$0xf]
        %v239 = vmul.f32 %v224, %v224
        %v241 = vcombine.high %v239, %v239
        %v243 = vsel %vm229, %v239, 0.0
        %v244 = vsel %vm229, %v241, 0.0
        %v245 = vadd.f32 %v243, %v244
        %246 = vadd.xlane.f32.xlu0 %v245
        %v247 = vpop.xlane.xlu0 %246
        %v248 = vadd.f32 %v238, %v247
        %249 = vst.msk [vmem:[#allocation3] sm:$0xf] %vm236, %v248
        %p250 = scmp.eq.s32.totalorder %s216, 1
        // Predicated region
        $region41: #{tpu_custom_call.1} parent=31 // pred_check
          %p251 = pneg %p250
        $region42: #{tpu_custom_call.1} parent=31 // pred_check_branch
          %253 = sbr.rel (%p251) target = $region44
        $region43: #{tpu_custom_call.1} parent=31 // pred_region
          %v254 = vld [vmem:[#allocation2] sm:$0xf]
          %v255 = vmul.f32 %v254, 0.001953125
          %v256 = vld [vmem:[#allocation3] sm:$0xf]
          %v257 = vmul.f32 %v256, 0.001953125
          %v258 = vmul.f32 %v255, %v255
          %v259 = vsub.f32 %v257, %v258
          %v260 = vmax.f32 %v259, 0.0
          %v261 = vadd.f32 %v260, 1e-05
          %v262 = vrsqrt.pop %v261
          %v263 = vld [vmem:[%s1] sm:$0xf]
          %v264 = vmul.f32 %v263, %v262
          %265 = vst.msk [vmem:[%s3] sm:$0xf] %vm236, %v264
          %v266 = vld [vmem:[%s2] sm:$0xf]
          %v267 = vmul.f32 %v255, %v264
          %v268 = vsub.f32 %v266, %v267
          %269 = vst.msk [vmem:[%s4] sm:$0xf] %vm236, %v268
        $region44: #{tpu_custom_call.1} parent=31 // pred_fallthru
          _
        // Predicated region
        $region45: #{tpu_custom_call.1} parent=31 // pred_check
          %p270 = pneg %p114
        $region46: #{tpu_custom_call.1} parent=31 // pred_check_branch
          %272 = sbr.rel (%p270) target = $region48
        $region47: #{tpu_custom_call.1} parent=31 // pred_region
          _
        $region48: #{tpu_custom_call.1} parent=31 // pred_fallthru
          _
        // Predicated region
        $region49: #{tpu_custom_call.1} parent=31 // pred_check
          %p273 = pneg %p135
        $region50: #{tpu_custom_call.1} parent=31 // pred_check_branch
          %275 = sbr.rel (%p273) target = $region52
        $region51: #{tpu_custom_call.1} parent=31 // pred_region
          _
        $region52: #{tpu_custom_call.1} parent=31 // pred_fallthru
          _
        // Predicated region
        $region53: #{tpu_custom_call.1} parent=31 // pred_check
          %p276 = pneg %p114
        $region54: #{tpu_custom_call.1} parent=31 // pred_check_branch
          %278 = sbr.rel (%p276) target = $region56
        $region55: #{tpu_custom_call.1} parent=31 // pred_region
          _
        $region56: #{tpu_custom_call.1} parent=31 // pred_fallthru
          _
        // Predicated region
        $region57: #{tpu_custom_call.1} parent=31 // pred_check
          %p279 = pneg %p135
        $region58: #{tpu_custom_call.1} parent=31 // pred_check_branch
          %281 = sbr.rel (%p279) target = $region60
        $region59: #{tpu_custom_call.1} parent=31 // pred_region
          _
        $region60: #{tpu_custom_call.1} parent=31 // pred_fallthru
          _
      $region32: #{tpu_custom_call.1} parent=5 // pred_fallthru
        _
      %p282 = scmp.le.s32.totalorder 2, %s14
      // Predicated region
      $region61: #{tpu_custom_call.1} parent=5 // pred_check
        %p283 = pneg %p282
      $region62: #{tpu_custom_call.1} parent=5 // pred_check_branch
        %285 = sbr.rel (%p283) target = $region64
      $region63: #{tpu_custom_call.1} parent=5 // pred_region
        %s286 = ssub.s32 %s14, 2
      $region64: #{tpu_custom_call.1} parent=5 // pred_fallthru
        _
    $region6: #{tpu_custom_call.1} parent=1 // loop_footer
      %s18 = sadd.s32 1, %s14
    $region7: #{tpu_custom_call.1} parent=1 // loop_footer_branch
      %13 = sbr.rel target = $region3
    $region8: #{tpu_custom_call.1} parent=1 // loop_exit
      _
    %287 = vsyncpa [#allocation5], 1
    %s288 = scalar_lea.sflag [#allocation5], 1
    %289 = vsyncpa %s288, 1

</llo_original>
